<compile_context>
chip_gen: v6e
topology: v6e:2x2x1
jax: 0.10.0
libtpu: 0.0.40
codegen_flags: <defaults>
</compile_context>

<pallas_src>
import functools

import jax
import jax.numpy as jnp
from jax.experimental import pallas as pl
from jax.experimental.pallas import tpu as pltpu


def attention_kernel(x_ref, w1t_ref, b1_ref, w2_ref, out_ref, *, C):
    """One block: rows = B*C flattened (b major, c minor), cols = D."""
    BC = x_ref.shape[0]

    # ltr1: Linear(D, D) on the MXU -- x cast to bf16 in VMEM, f32 accumulation.
    x_bf16 = x_ref[...].astype(jnp.bfloat16)
    h = jnp.dot(x_bf16, w1t_ref[...], preferred_element_type=jnp.float32)
    h = jnp.maximum(h + b1_ref[...], 0.0)                       # (BC, D) f32, ReLU

    # ltr2: Linear(D, 1) as elementwise mul + lane reduction (avoids an N=1
    # MXU push).  b2 omitted: scalar shift cancels in the batch-axis softmax.
    s = jnp.sum(h * w2_ref[...], axis=-1, keepdims=True)        # (BC, 1) f32

    # Per-channel softmax over the batch axis, fully in-kernel, no HBM mask.
    # Column j of the (BC, BC) tile corresponds to output row j (= b*C + c);
    # sublane r' ranges over all BC scores.  same_channel[r', j] selects the
    # scores belonging to output row j's channel.
    row = jax.lax.broadcasted_iota(jnp.int32, (BC, BC), 0)       # r' (sublane)
    col = jax.lax.broadcasted_iota(jnp.int32, (BC, BC), 1)       # j  (lane)
    same_channel = (row % C) == (col % C)
    diag = row == col

    s_col = jnp.broadcast_to(s, (BC, BC))                        # s_col[r', j] = s[r']
    # Numerically robust: PER-CHANNEL max over the batch (masked sublane max).
    m = jnp.max(jnp.where(same_channel, s_col, -jnp.inf),
                axis=0, keepdims=True)                           # (1, BC)
    e = jnp.where(same_channel, jnp.exp(s_col - m), 0.0)         # (BC, BC)
    denom = jnp.sum(e, axis=0, keepdims=True)                    # (1, BC), >= 1
    num = jnp.sum(jnp.where(diag, e, 0.0), axis=0, keepdims=True)  # (1, BC) = diag(e)

    # Exact divide (only BC scalars; not on any critical path).
    out_ref[...] = num / denom                                   # lane-dense (1, BC)


def prepare_attention_params(w1, b1, w2):
    """One-time parameter prep (static w.r.t. the weights) -- hoisted out of
    the per-call path so the transpose / bf16 cast are not re-done per forward."""
    w1t = jnp.asarray(w1).T.astype(jnp.bfloat16)            # (D, D); kernel does x @ w1t
    b1r = jnp.asarray(b1, jnp.float32).reshape(1, -1)        # (1, D)
    w2r = jnp.asarray(w2, jnp.float32).reshape(1, -1)        # (1, D)
    return w1t, b1r, w2r


def attention_forward(x, params, input_channels, input_size):
    """x: (B, C, H, W) float32.  Returns (B, C, 1) float32 (softmax over dim 0)."""
    w1t, b1r, w2r = params
    C = input_channels
    D = input_size * input_size
    BC = x.size // D                                         # mirrors x.view(-1, C, D)
    B = BC // C

    # Contiguous flatten only -- no transpose / cast / extra HBM pass over x.
    x2 = x.reshape(BC, D)

    kernel = functools.partial(attention_kernel, C=C)

    out = pl.pallas_call(
        kernel,
        out_shape=jax.ShapeDtypeStruct((1, BC), jnp.float32),
        grid=(1,),
        in_specs=[
            pl.BlockSpec((BC, D), lambda i: (0, 0)),         # x (f32, cast in-kernel)
            pl.BlockSpec((D, D), lambda i: (0, 0)),          # W1^T (bf16, resident)
            pl.BlockSpec((1, D), lambda i: (0, 0)),          # b1
            pl.BlockSpec((1, D), lambda i: (0, 0)),          # w2
        ],
        out_specs=pl.BlockSpec((1, BC), lambda i: (0, 0)),
        compiler_params=pltpu.CompilerParams(
            # Single coupled block (softmax reduces over the batch axis), so a
            # single grid step; a "parallel" row axis only pays off once
            # independent samples are stacked into one call.
            dimension_semantics=("arbitrary",),
        ),
    )(x2, w1t, b1r, w2r)

    # (1, BC) row is ordered (b major, c minor) -> contiguous reshape, free.
    return out.reshape(B, C, 1)


def attention_reference(x, w1, b1, w2, b2, input_channels, input_size):
    """Pure-JAX (f32) re-implementation of the PyTorch forward for validation."""
    C = input_channels
    D = input_size * input_size
    xr = x.reshape(-1, C, D)
    a = xr @ w1.T + b1
    a = jnp.maximum(a, 0.0)
    a = a @ w2.T + b2                  # (B, C, 1)
    # nn.Softmax() default dim for 3-D input resolves to dim 0
    return jax.nn.softmax(a, axis=0)


if __name__ == "__main__":
    # Small shapes consistent with the module
    B, C, H = 2, 4, 16
    input_channels, input_size = C, H
    D = input_size * input_size

    key = jax.random.PRNGKey(0)
    kx, k1, k2, k3, k4 = jax.random.split(key, 5)

    # Deterministic parameter init (PyTorch Linear default: U(-1/sqrt(fan_in), +))
    bound1 = 1.0 / (D ** 0.5)
    w1 = jax.random.uniform(k1, (D, D), jnp.float32, -bound1, bound1)   # ltr1.weight
    b1 = jax.random.uniform(k2, (D,), jnp.float32, -bound1, bound1)     # ltr1.bias
    w2 = jax.random.uniform(k3, (1, D), jnp.float32, -bound1, bound1)   # ltr2.weight
    b2 = jax.random.uniform(k4, (1,), jnp.float32, -bound1, bound1)     # ltr2.bias

    x = jax.random.normal(kx, (B, C, H, H), jnp.float32)

    # One-time weight prep (outside the per-call path).
    params = prepare_attention_params(w1, b1, w2)

    out = attention_forward(x, params, input_channels, input_size)
    out = jax.block_until_ready(out)

    ref = attention_reference(x, w1, b1, w2, b2, input_channels, input_size)
    assert out.shape == (B, C, 1), out.shape
    # Remaining error is dominated by the bf16 MXU inputs (x, W1); the divide
    # is now exact and the max is per-channel, so each channel sums to ~1.
    assert jnp.allclose(out, ref, atol=1e-2, rtol=1e-2), (
        f"max abs err = {jnp.max(jnp.abs(out - ref))}"
    )
    col_sums = out.sum(axis=0)
    assert jnp.allclose(col_sums, 1.0, atol=1e-5), col_sums

    print("KERNEL_OK")
</pallas_src>

<mosaic_0001>
module attributes {stable_mosaic.version = 11 : i64} {
  func.func @attention_kernel(%arg0: i32, %arg1: memref<8x256xf32, #tpu.memory_space<vmem>>, %arg2: memref<256x256xbf16, #tpu.memory_space<vmem>>, %arg3: memref<1x256xf32, #tpu.memory_space<vmem>>, %arg4: memref<1x256xf32, #tpu.memory_space<vmem>>, %arg5: memref<1x8xf32, #tpu.memory_space<vmem>>) attributes {dimension_semantics = [#tpu.dimension_semantics<arbitrary>], iteration_bounds = array<i64: 1>, scalar_prefetch = 0 : i64, scratch_operands = 0 : i64, tpu.core_type = #tpu.core_type<tc>, window_params = [{pipeline_mode = #tpu.pipeline_mode<synchronous>, transform_indices = @transform_0, window_bounds = array<i64: 8, 256>}, {pipeline_mode = #tpu.pipeline_mode<synchronous>, transform_indices = @transform_1, window_bounds = array<i64: 256, 256>}, {pipeline_mode = #tpu.pipeline_mode<synchronous>, transform_indices = @transform_2, window_bounds = array<i64: 1, 256>}, {pipeline_mode = #tpu.pipeline_mode<synchronous>, transform_indices = @transform_3, window_bounds = array<i64: 1, 256>}, {pipeline_mode = #tpu.pipeline_mode<synchronous>, transform_indices = @transform_4, window_bounds = array<i64: 1, 8>}]} {
    %c0 = arith.constant 0 : index
    %c0_0 = arith.constant 0 : index
    %0 = vector.load %arg1[%c0, %c0_0] : memref<8x256xf32, #tpu.memory_space<vmem>>, vector<8x256xf32>
    %1 = arith.truncf %0 : vector<8x256xf32> to vector<8x256xbf16>
    %c0_1 = arith.constant 0 : index
    %c0_2 = arith.constant 0 : index
    %2 = vector.load %arg2[%c0_1, %c0_2] : memref<256x256xbf16, #tpu.memory_space<vmem>>, vector<256x256xbf16>
    %cst = arith.constant dense<0.000000e+00> : vector<8x256xf32>
    %3 = tpu.matmul %1, %2, %cst {dimension_numbers = #tpu.dot_dimension_numbers<[1], [0], [0], [1], [0, 0, 1, 1], [], []>} : vector<8x256xbf16>, vector<256x256xbf16>, vector<8x256xf32> -> vector<8x256xf32>
    %c0_3 = arith.constant 0 : index
    %c0_4 = arith.constant 0 : index
    %4 = vector.load %arg3[%c0_3, %c0_4] : memref<1x256xf32, #tpu.memory_space<vmem>>, vector<1x256xf32>
    %5 = vector.broadcast %4 : vector<1x256xf32> to vector<8x256xf32>
    %6 = arith.addf %3, %5 : vector<8x256xf32>
    %cst_5 = arith.constant 0.000000e+00 : f32
    %7 = vector.broadcast %cst_5 : f32 to vector<8x256xf32>
    %8 = arith.maximumf %6, %7 : vector<8x256xf32>
    %c0_6 = arith.constant 0 : index
    %c0_7 = arith.constant 0 : index
    %9 = vector.load %arg4[%c0_6, %c0_7] : memref<1x256xf32, #tpu.memory_space<vmem>>, vector<1x256xf32>
    %10 = vector.broadcast %9 : vector<1x256xf32> to vector<8x256xf32>
    %11 = arith.mulf %8, %10 : vector<8x256xf32>
    %cst_8 = arith.constant dense<0.000000e+00> : vector<8xf32>
    %12 = vector.multi_reduction <add>, %11, %cst_8 [1] : vector<8x256xf32> to vector<8xf32>
    %13 = vector.shape_cast %12 : vector<8xf32> to vector<8x1xf32>
    %14 = tpu.iota {dimensions = array<i32: 0>} : vector<8x8xi32>
    %15 = tpu.iota {dimensions = array<i32: 1>} : vector<8x8xi32>
    %c4_i32 = arith.constant 4 : i32
    %c0_i32 = arith.constant 0 : i32
    %16 = arith.cmpi eq, %c4_i32, %c0_i32 : i32
    %c1_i32 = arith.constant 1 : i32
    %17 = arith.select %16, %c1_i32, %c4_i32 : i32
    %18 = vector.broadcast %17 : i32 to vector<8x8xi32>
    %19 = arith.remsi %14, %18 : vector<8x8xi32>
    %c0_i32_9 = arith.constant 0 : i32
    %20 = vector.broadcast %c0_i32_9 : i32 to vector<8x8xi32>
    %21 = arith.cmpi ne, %19, %20 : vector<8x8xi32>
    %c0_i32_10 = arith.constant 0 : i32
    %22 = vector.broadcast %c0_i32_10 : i32 to vector<8x8xi32>
    %23 = arith.cmpi slt, %19, %22 : vector<8x8xi32>
    %c0_i32_11 = arith.constant 0 : i32
    %24 = arith.cmpi slt, %17, %c0_i32_11 : i32
    %25 = vector.broadcast %24 : i1 to vector<8x8xi1>
    %26 = vector.broadcast %25 : vector<8x8xi1> to vector<8x8xi1>
    %27 = arith.xori %23, %26 : vector<8x8xi1>
    %28 = arith.andi %27, %21 : vector<8x8xi1>
    %29 = vector.broadcast %17 : i32 to vector<8x8xi32>
    %30 = arith.addi %19, %29 : vector<8x8xi32>
    %31 = arith.select %28, %30, %19 : vector<8x8xi1>, vector<8x8xi32>
    %c4_i32_12 = arith.constant 4 : i32
    %c0_i32_13 = arith.constant 0 : i32
    %32 = arith.cmpi eq, %c4_i32_12, %c0_i32_13 : i32
    %c1_i32_14 = arith.constant 1 : i32
    %33 = arith.select %32, %c1_i32_14, %c4_i32_12 : i32
    %34 = vector.broadcast %33 : i32 to vector<8x8xi32>
    %35 = arith.remsi %15, %34 : vector<8x8xi32>
    %c0_i32_15 = arith.constant 0 : i32
    %36 = vector.broadcast %c0_i32_15 : i32 to vector<8x8xi32>
    %37 = arith.cmpi ne, %35, %36 : vector<8x8xi32>
    %c0_i32_16 = arith.constant 0 : i32
    %38 = vector.broadcast %c0_i32_16 : i32 to vector<8x8xi32>
    %39 = arith.cmpi slt, %35, %38 : vector<8x8xi32>
    %c0_i32_17 = arith.constant 0 : i32
    %40 = arith.cmpi slt, %33, %c0_i32_17 : i32
    %41 = vector.broadcast %40 : i1 to vector<8x8xi1>
    %42 = vector.broadcast %41 : vector<8x8xi1> to vector<8x8xi1>
    %43 = arith.xori %39, %42 : vector<8x8xi1>
    %44 = arith.andi %43, %37 : vector<8x8xi1>
    %45 = vector.broadcast %33 : i32 to vector<8x8xi32>
    %46 = arith.addi %35, %45 : vector<8x8xi32>
    %47 = arith.select %44, %46, %35 : vector<8x8xi1>, vector<8x8xi32>
    %48 = arith.cmpi eq, %31, %47 : vector<8x8xi32>
    %49 = arith.cmpi eq, %14, %15 : vector<8x8xi32>
    %50 = vector.shape_cast %13 : vector<8x1xf32> to vector<8x1xf32>
    %51 = vector.broadcast %50 : vector<8x1xf32> to vector<8x8xf32>
    %cst_18 = arith.constant 0xFF800000 : f32
    %52 = vector.broadcast %cst_18 : f32 to vector<8x8xf32>
    %53 = arith.select %48, %51, %52 : vector<8x8xi1>, vector<8x8xf32>
    %cst_19 = arith.constant dense<0xFF800000> : vector<8xf32>
    %54 = vector.multi_reduction <maximumf>, %53, %cst_19 [0] : vector<8x8xf32> to vector<8xf32>
    %55 = vector.shape_cast %54 : vector<8xf32> to vector<1x8xf32>
    %56 = vector.broadcast %55 : vector<1x8xf32> to vector<8x8xf32>
    %57 = arith.subf %51, %56 : vector<8x8xf32>
    %58 = math.exp %57 : vector<8x8xf32>
    %cst_20 = arith.constant 0.000000e+00 : f32
    %59 = vector.broadcast %cst_20 : f32 to vector<8x8xf32>
    %60 = arith.select %48, %58, %59 : vector<8x8xi1>, vector<8x8xf32>
    %cst_21 = arith.constant dense<0.000000e+00> : vector<8xf32>
    %61 = vector.multi_reduction <add>, %60, %cst_21 [0] : vector<8x8xf32> to vector<8xf32>
    %62 = vector.shape_cast %61 : vector<8xf32> to vector<1x8xf32>
    %cst_22 = arith.constant 0.000000e+00 : f32
    %63 = vector.broadcast %cst_22 : f32 to vector<8x8xf32>
    %64 = arith.select %49, %60, %63 : vector<8x8xi1>, vector<8x8xf32>
    %cst_23 = arith.constant dense<0.000000e+00> : vector<8xf32>
    %65 = vector.multi_reduction <add>, %64, %cst_23 [0] : vector<8x8xf32> to vector<8xf32>
    %66 = vector.shape_cast %65 : vector<8xf32> to vector<1x8xf32>
    %67 = arith.divf %66, %62 : vector<1x8xf32>
    %c0_24 = arith.constant 0 : index
    %c0_25 = arith.constant 0 : index
    %68 = vector.load %arg5[%c0_24, %c0_25] : memref<1x8xf32, #tpu.memory_space<vmem>>, vector<1x8xf32>
    tpu.vector_store %arg5[%c0_24, %c0_25], %67 {strides = array<i32>} : memref<1x8xf32, #tpu.memory_space<vmem>>, vector<1x8xf32>,
    return
  }
  func.func @transform_0(%arg0: i32) -> (i32, i32) {
    %c0_i32 = arith.constant 0 : i32
    %c0_i32_0 = arith.constant 0 : i32
    %c0_i32_1 = arith.constant 0 : i32
    return %c0_i32, %c0_i32_0 : i32, i32
  }
  func.func @transform_1(%arg0: i32) -> (i32, i32) {
    %c0_i32 = arith.constant 0 : i32
    %c0_i32_0 = arith.constant 0 : i32
    %c0_i32_1 = arith.constant 0 : i32
    return %c0_i32, %c0_i32_0 : i32, i32
  }
  func.func @transform_2(%arg0: i32) -> (i32, i32) {
    %c0_i32 = arith.constant 0 : i32
    %c0_i32_0 = arith.constant 0 : i32
    %c0_i32_1 = arith.constant 0 : i32
    return %c0_i32, %c0_i32_0 : i32, i32
  }
  func.func @transform_3(%arg0: i32) -> (i32, i32) {
    %c0_i32 = arith.constant 0 : i32
    %c0_i32_0 = arith.constant 0 : i32
    %c0_i32_1 = arith.constant 0 : i32
    return %c0_i32, %c0_i32_0 : i32, i32
  }
  func.func @transform_4(%arg0: i32) -> (i32, i32) {
    %c0_i32 = arith.constant 0 : i32
    %c0_i32_0 = arith.constant 0 : i32
    %c0_i32_1 = arith.constant 0 : i32
    return %c0_i32, %c0_i32_0 : i32, i32
  }
}

</mosaic_0001>

<llo_original>
// kernel: tpu_custom_call.1
$region0: #{tpu_custom_call.1}
  #allocation0 [shape = 'u32[]', space=smem, size = 0x4, offset = 0x4, fixed_abs, tag = 'smem constant byte address 0x4 - core index']
  #allocation1 [shape = 'u32[144,128]{1,0:T(1,128)}', space=vmem, size = 0x12000, scoped, tag = 'internal scratch']
  %s0 = inlined_call_operand.hbm [shape: f32[8,256], index: 0, kind: input, shape index: {}]
  %s1 = inlined_call_operand.hbm [shape: bf16[256,256], index: 1, kind: input, shape index: {}]
  %s2 = inlined_call_operand.vmem [shape: f32[1,256], index: 2, kind: input, shape index: {}]
  %s3 = inlined_call_operand.vmem [shape: f32[1,256], index: 3, kind: input, shape index: {}]
  %s4 = inlined_call_operand.hbm [shape: f32[1,8], index: 4, kind: output, shape index: {}]
  %s5 = sld [smem:[#allocation0]]
  $region34: #{tpu_custom_call.1} parent=0
    _
  %s7 = ssub.s32 1, %s5
  %s8 = scalar_select 0, %s7, %s5
  $region1: #{tpu_custom_call.1} parent=0
    #allocation2 [shape = 'u8[8192]{0}', space=vmem, size = 0x2000, scoped, tag = 'input window, operand 0, single buffered']
    #allocation3 [shape = 's32[1]{0}', space=sflag, size = 0x4, scoped, tag = 'scoped memory for tpu_custom_call.1']
    #allocation4 [shape = 's32[1]{0}', space=sflag, size = 0x4, scoped, tag = 'scoped memory for tpu_custom_call.1']
    #allocation5 [shape = 'u8[131072]{0}', space=vmem, size = 0x20000, scoped, tag = 'input window, operand 1, single buffered']
    #allocation6 [shape = 's32[1]{0}', space=sflag, size = 0x4, scoped, tag = 'scoped memory for tpu_custom_call.1']
    #allocation7 [shape = 'u8[512]{0}', space=vmem, size = 0x400, scoped, tag = 'output window, operand 0, single buffered']
    %9 = vsyncpa [#allocation3], 0
    %10 = vsyncpa [#allocation6], 0
    %11 = vsyncpa [#allocation4], 0
    // Predicated region
    $region2: #{tpu_custom_call.1} parent=1 // pred_check
      _
    $region3: #{tpu_custom_call.1} parent=1 // pred_check_branch
      %13 = sbr.rel (0) target = $region5
    $region4: #{tpu_custom_call.1} parent=1 // pred_region
      %s15 = ssub.s32 256, 256
      %16 = vsyncadd [#allocation3], %s15
      %s18 = sshll.u32 [#allocation2], 4
      %s19 = int_to_ptr.vmem [resolvable:$true] %s18
      %21 = dma.hbm_to_vmem [thread:$0]  %s0, 256, %s19, [#allocation3]
    $region5: #{tpu_custom_call.1} parent=1 // pred_fallthru
      _
    // Predicated region
    $region6: #{tpu_custom_call.1} parent=1 // pred_check
      _
    $region7: #{tpu_custom_call.1} parent=1 // pred_check_branch
      %23 = sbr.rel (0) target = $region9
    $region8: #{tpu_custom_call.1} parent=1 // pred_region
      %s25 = ssub.s32 4096, 4096
      %26 = vsyncadd [#allocation6], %s25
      %s27 = sshll.u32 [#allocation5], 4
      %s28 = int_to_ptr.vmem [resolvable:$true] %s27
      %33 = dma.hbm_to_vmem [thread:$0]  %s1, 4096, %s28, [#allocation6], 128, 128, 8
    $region9: #{tpu_custom_call.1} parent=1 // pred_fallthru
      _
    // Predicated region
    $region10: #{tpu_custom_call.1} parent=1 // pred_check
      _
    $region11: #{tpu_custom_call.1} parent=1 // pred_check_branch
      %35 = sbr.rel (0) target = $region13
    $region12: #{tpu_custom_call.1} parent=1 // pred_region
      _
    $region13: #{tpu_custom_call.1} parent=1 // pred_fallthru
      _
    // Predicated region
    $region14: #{tpu_custom_call.1} parent=1 // pred_check
      _
    $region15: #{tpu_custom_call.1} parent=1 // pred_check_branch
      %37 = sbr.rel (0) target = $region17
    $region16: #{tpu_custom_call.1} parent=1 // pred_region
      _
    $region17: #{tpu_custom_call.1} parent=1 // pred_fallthru
      _
    // Predicated region
    $region18: #{tpu_custom_call.1} parent=1 // pred_check
      _
    $region19: #{tpu_custom_call.1} parent=1 // pred_check_branch
      %39 = sbr.rel (0) target = $region21
    $region20: #{tpu_custom_call.1} parent=1 // pred_region
      %40 = dma.done [#allocation3], 256
    $region21: #{tpu_custom_call.1} parent=1 // pred_fallthru
      _
    // Predicated region
    $region22: #{tpu_custom_call.1} parent=1 // pred_check
      _
    $region23: #{tpu_custom_call.1} parent=1 // pred_check_branch
      %42 = sbr.rel (0) target = $region25
    $region24: #{tpu_custom_call.1} parent=1 // pred_region
      %43 = dma.done [#allocation6], 4096
    $region25: #{tpu_custom_call.1} parent=1 // pred_fallthru
      _
    %v44 = vld [vmem:[#allocation2] sm:$0xff]
    %v45 = vld [vmem:[#allocation2 + $0x8] sm:$0xff]
    %v46 = vpack.c.bf16 %v44, %v44
    %v47 = vpack.c.bf16 %v45, %v45
    %v48 = vld [vmem:[#allocation5] sm:$0xff]
    %v49 = vld [vmem:[#allocation5 + $0x8] sm:$0xff]
    %v50 = vld [vmem:[#allocation5 + $0x10] sm:$0xff]
    %v51 = vld [vmem:[#allocation5 + $0x18] sm:$0xff]
    %v52 = vld [vmem:[#allocation5 + $0x20] sm:$0xff]
    %v53 = vld [vmem:[#allocation5 + $0x28] sm:$0xff]
    %v54 = vld [vmem:[#allocation5 + $0x30] sm:$0xff]
    %v55 = vld [vmem:[#allocation5 + $0x38] sm:$0xff]
    %v56 = vld [vmem:[#allocation5 + $0x40] sm:$0xff]
    %v57 = vld [vmem:[#allocation5 + $0x48] sm:$0xff]
    %v58 = vld [vmem:[#allocation5 + $0x50] sm:$0xff]
    %v59 = vld [vmem:[#allocation5 + $0x58] sm:$0xff]
    %v60 = vld [vmem:[#allocation5 + $0x60] sm:$0xff]
    %v61 = vld [vmem:[#allocation5 + $0x68] sm:$0xff]
    %v62 = vld [vmem:[#allocation5 + $0x70] sm:$0xff]
    %v63 = vld [vmem:[#allocation5 + $0x78] sm:$0xff]
    %v64 = vld [vmem:[#allocation5 + $0x80] sm:$0xff]
    %v65 = vld [vmem:[#allocation5 + $0x88] sm:$0xff]
    %v66 = vld [vmem:[#allocation5 + $0x90] sm:$0xff]
    %v67 = vld [vmem:[#allocation5 + $0x98] sm:$0xff]
    %v68 = vld [vmem:[#allocation5 + $0xa0] sm:$0xff]
    %v69 = vld [vmem:[#allocation5 + $0xa8] sm:$0xff]
    %v70 = vld [vmem:[#allocation5 + $0xb0] sm:$0xff]
    %v71 = vld [vmem:[#allocation5 + $0xb8] sm:$0xff]
    %v72 = vld [vmem:[#allocation5 + $0xc0] sm:$0xff]
    %v73 = vld [vmem:[#allocation5 + $0xc8] sm:$0xff]
    %v74 = vld [vmem:[#allocation5 + $0xd0] sm:$0xff]
    %v75 = vld [vmem:[#allocation5 + $0xd8] sm:$0xff]
    %v76 = vld [vmem:[#allocation5 + $0xe0] sm:$0xff]
    %v77 = vld [vmem:[#allocation5 + $0xe8] sm:$0xff]
    %v78 = vld [vmem:[#allocation5 + $0xf0] sm:$0xff]
    %v79 = vld [vmem:[#allocation5 + $0xf8] sm:$0xff]
    %v80 = vld [vmem:[%s2] sm:$0x3]
    %v82 = vlaneseq
    %v83 = vshrl.u32 %v82, 7
    %v84 = vsub.s32 0, %v83
    %v85 = vrot.slane %v80, %v84
    %v86 = vlaneseq
    %v87 = vshrl.u32 %v86, 7
    %v88 = vsub.s32 1, %v87
    %v89 = vrot.slane %v80, %v88
    %v124 = vunpack.c.l.b16 %v48
    %v125 = vunpack.c.h.b16 %v48
    %v126 = vunpack.c.l.b16 %v49
    %v127 = vunpack.c.h.b16 %v49
    %v128 = vunpack.c.l.b16 %v50
    %v129 = vunpack.c.h.b16 %v50
    %v130 = vunpack.c.l.b16 %v51
    %v131 = vunpack.c.h.b16 %v51
    %v132 = vunpack.c.l.b16 %v52
    %v133 = vunpack.c.h.b16 %v52
    %v134 = vunpack.c.l.b16 %v53
    %v135 = vunpack.c.h.b16 %v53
    %v136 = vunpack.c.l.b16 %v54
    %v137 = vunpack.c.h.b16 %v54
    %v138 = vunpack.c.l.b16 %v55
    %v139 = vunpack.c.h.b16 %v55
    %v140 = vunpack.c.l.b16 %v56
    %v141 = vunpack.c.h.b16 %v56
    %v142 = vunpack.c.l.b16 %v57
    %v143 = vunpack.c.h.b16 %v57
    %v144 = vunpack.c.l.b16 %v58
    %v145 = vunpack.c.h.b16 %v58
    %v146 = vunpack.c.l.b16 %v59
    %v147 = vunpack.c.h.b16 %v59
    %v148 = vunpack.c.l.b16 %v60
    %v149 = vunpack.c.h.b16 %v60
    %v150 = vunpack.c.l.b16 %v61
    %v151 = vunpack.c.h.b16 %v61
    %v152 = vunpack.c.l.b16 %v62
    %v153 = vunpack.c.h.b16 %v62
    %v154 = vunpack.c.l.b16 %v63
    %v155 = vunpack.c.h.b16 %v63
    %v156 = vunpack.c.l.b16 %v64
    %v157 = vunpack.c.h.b16 %v64
    %v158 = vunpack.c.l.b16 %v65
    %v159 = vunpack.c.h.b16 %v65
    %v160 = vunpack.c.l.b16 %v66
    %v161 = vunpack.c.h.b16 %v66
    %v162 = vunpack.c.l.b16 %v67
    %v163 = vunpack.c.h.b16 %v67
    %v164 = vunpack.c.l.b16 %v68
    %v165 = vunpack.c.h.b16 %v68
    %v166 = vunpack.c.l.b16 %v69
    %v167 = vunpack.c.h.b16 %v69
    %v168 = vunpack.c.l.b16 %v70
    %v169 = vunpack.c.h.b16 %v70
    %v170 = vunpack.c.l.b16 %v71
    %v171 = vunpack.c.h.b16 %v71
    %v172 = vunpack.c.l.b16 %v72
    %v173 = vunpack.c.h.b16 %v72
    %v174 = vunpack.c.l.b16 %v73
    %v175 = vunpack.c.h.b16 %v73
    %v176 = vunpack.c.l.b16 %v74
    %v177 = vunpack.c.h.b16 %v74
    %v178 = vunpack.c.l.b16 %v75
    %v179 = vunpack.c.h.b16 %v75
    %v180 = vunpack.c.l.b16 %v76
    %v181 = vunpack.c.h.b16 %v76
    %v182 = vunpack.c.l.b16 %v77
    %v183 = vunpack.c.h.b16 %v77
    %v184 = vunpack.c.l.b16 %v78
    %v185 = vunpack.c.h.b16 %v78
    %v186 = vunpack.c.l.b16 %v79
    %v187 = vunpack.c.h.b16 %v79
    %v188 = vpack.c.b16 %v126, %v124
    %v189 = vpack.c.b16 %v127, %v125
    %v190 = vpack.c.b16 %v130, %v128
    %v191 = vpack.c.b16 %v131, %v129
    %v192 = vpack.c.b16 %v134, %v132
    %v193 = vpack.c.b16 %v135, %v133
    %v194 = vpack.c.b16 %v138, %v136
    %v195 = vpack.c.b16 %v139, %v137
    %v196 = vpack.c.b16 %v142, %v140
    %v197 = vpack.c.b16 %v143, %v141
    %v198 = vpack.c.b16 %v146, %v144
    %v199 = vpack.c.b16 %v147, %v145
    %v200 = vpack.c.b16 %v150, %v148
    %v201 = vpack.c.b16 %v151, %v149
    %v202 = vpack.c.b16 %v154, %v152
    %v203 = vpack.c.b16 %v155, %v153
    %v204 = vpack.c.b16 %v158, %v156
    %v205 = vpack.c.b16 %v159, %v157
    %v206 = vpack.c.b16 %v162, %v160
    %v207 = vpack.c.b16 %v163, %v161
    %v208 = vpack.c.b16 %v166, %v164
    %v209 = vpack.c.b16 %v167, %v165
    %v210 = vpack.c.b16 %v170, %v168
    %v211 = vpack.c.b16 %v171, %v169
    %v212 = vpack.c.b16 %v174, %v172
    %v213 = vpack.c.b16 %v175, %v173
    %v214 = vpack.c.b16 %v178, %v176
    %v215 = vpack.c.b16 %v179, %v177
    %v216 = vpack.c.b16 %v182, %v180
    %v217 = vpack.c.b16 %v183, %v181
    %v218 = vpack.c.b16 %v186, %v184
    %v219 = vpack.c.b16 %v187, %v185
    %252 = vmatprep.subr.bf16.mxu0 %v203
    %253 = vmatpush1.bf16.msra.mxu0 %v202
    %254 = vmatprep.subr.bf16.mxu0 %v201
    %255 = vmatpush1.bf16.msra.mxu0 %v200
    %256 = vmatprep.subr.bf16.mxu0 %v199
    %257 = vmatpush1.bf16.msra.mxu0 %v198
    %258 = vmatprep.subr.bf16.mxu0 %v197
    %259 = vmatpush1.bf16.msra.mxu0 %v196
    %260 = vmatprep.subr.bf16.mxu0 %v195
    %261 = vmatpush1.bf16.msra.mxu0 %v194
    %262 = vmatprep.subr.bf16.mxu0 %v193
    %263 = vmatpush1.bf16.msra.mxu0 %v192
    %264 = vmatprep.subr.bf16.mxu0 %v191
    %265 = vmatpush1.bf16.msra.mxu0 %v190
    %266 = vmatprep.subr.bf16.mxu0 %v189
    %267 = vmatpush1.bf16.msra.mxu0 %v188
    %268 = vmatprep.subr.bf16.mxu0 %v219
    %269 = vmatpush2.bf16.msra.mxu0 %v218
    %270 = vmatprep.subr.bf16.mxu0 %v217
    %271 = vmatpush2.bf16.msra.mxu0 %v216
    %272 = vmatprep.subr.bf16.mxu0 %v215
    %273 = vmatpush2.bf16.msra.mxu0 %v214
    %274 = vmatprep.subr.bf16.mxu0 %v213
    %275 = vmatpush2.bf16.msra.mxu0 %v212
    %276 = vmatprep.subr.bf16.mxu0 %v211
    %277 = vmatpush2.bf16.msra.mxu0 %v210
    %278 = vmatprep.subr.bf16.mxu0 %v209
    %279 = vmatpush2.bf16.msra.mxu0 %v208
    %280 = vmatprep.subr.bf16.mxu0 %v207
    %281 = vmatpush2.bf16.msra.mxu0 %v206
    %282 = vmatprep.subr.bf16.mxu0 %v205
    %283 = vmatpush2.bf16.msra.mxu0 %v204
    %284 = vmatprep.mubr.bf16.mxu0 %v47
    %285 = vmatmul.mubr.bf16.gmra.mxu0 %v46
    %v286 = vpop.f32.mrf.mxu0
    %v287 = vadd.f32 %v85, %v286
    %v288 = vpop.f32.mrf.mxu0
    %v289 = vadd.f32 %v89, %v288
    %v290 = vpop.f32.mrf.mxu0
    %v291 = vpop.f32.mrf.mxu0
    %292 = vdwg.mxu0
    %v293 = vmax.f32 %v287, 0.0
    %v294 = vmax.f32 %v289, 0.0
    %v295 = vld [vmem:[%s3] sm:$0x3]
    %v297 = vlaneseq
    %v298 = vshrl.u32 %v297, 7
    %v299 = vsub.s32 0, %v298
    %v300 = vrot.slane %v295, %v299
    %v301 = vlaneseq
    %v302 = vshrl.u32 %v301, 7
    %v303 = vsub.s32 1, %v302
    %v304 = vrot.slane %v295, %v303
    %v307 = vmul.f32 %v293, %v300
    %v308 = vmul.f32 %v294, %v304
    %v309 = vadd.f32 %v307, %v308
    %310 = vadd.xlane.f32.xlu0 %v309
    %v311 = vpop.xlane.xlu0 %310
    %v312 = vlaneseq
    %v313 = vshrl.u32 %v312, 7
    %v314 = vlaneseq
    %v315 = vand.u32 %v314, 127
    %vm316 = vcmp.lt.s32.totalorder %v313, 0
    %v317 = vsub.s32 0, %v313
    %v318 = vsel %vm316, %v317, %v313
    %v319 = vshrl.u32 %v318, 2
    %v320 = vand.u32 %v318, 3
    %v321 = vsub.s32 0, %v320
    %v322 = vsel %vm316, %v321, %v320
    %vm323 = vcmp.ne.s32.totalorder %v322, 0
    %vm324 = vcmp.lt.s32.totalorder %v322, 0
    %vm325 = vmand %vm324, %vm323
    %v326 = vadd.s32 %v322, 4
    %v327 = vsel %vm325, %v326, %v322
    %vm328 = vcmp.lt.s32.totalorder %v315, 0
    %v329 = vsub.s32 0, %v315
    %v330 = vsel %vm328, %v329, %v315
    %v331 = vshrl.u32 %v330, 2
    %v332 = vand.u32 %v330, 3
    %v333 = vsub.s32 0, %v332
    %v334 = vsel %vm328, %v333, %v332
    %vm335 = vcmp.ne.s32.totalorder %v334, 0
    %vm336 = vcmp.lt.s32.totalorder %v334, 0
    %vm337 = vmand %vm336, %vm335
    %v338 = vadd.s32 %v334, 4
    %v339 = vsel %vm337, %v338, %v334
    %vm340 = vcmp.eq.s32.totalorder %v327, %v339
    %vm341 = vcmp.eq.s32.totalorder %v313, %v315
    %v342 = vsel %vm340, %v311, -inf
    %vm343 = vcmask 64512
    %v344 = vsel %vm343, %v342, -inf
    %v345 = vrot.slane %v344, 4
    %v346 = vmax.f32 %v344, %v345
    %v347 = vrot.slane %v346, 2
    %v348 = vmax.f32 %v346, %v347
    %v349 = vrot.slane %v348, 1
    %v350 = vmax.f32 %v348, %v349
    %v351 = vsub.f32 %v311, %v350
    %v352 = vmul.f32 %v351, 1.442695
    %v353 = vpow.pop %v352
    %v354 = vsel %vm340, %v353, 0.0
    %v355 = vsel %vm343, %v354, 0.0
    %v356 = vrot.slane %v355, 4
    %v357 = vadd.f32 %v355, %v356
    %v358 = vrot.slane %v357, 2
    %v359 = vadd.f32 %v357, %v358
    %v360 = vrot.slane %v359, 1
    %v361 = vadd.f32 %v359, %v360
    %v362 = vsel %vm341, %v354, 0.0
    %v363 = vsel %vm343, %v362, 0.0
    %v364 = vrot.slane %v363, 4
    %v365 = vadd.f32 %v363, %v364
    %v366 = vrot.slane %v365, 2
    %v367 = vadd.f32 %v365, %v366
    %v368 = vrot.slane %v367, 1
    %v369 = vadd.f32 %v367, %v368
    %v370 = vrcp.pop %v361
    %v371 = vmul.f32 %v369, %v370
    %vm372 = vcmask 57344
    %373 = vst.msk [vmem:[#allocation7] sm:$0x1] %vm372, %v371
    // Predicated region
    $region26: #{tpu_custom_call.1} parent=1 // pred_check
      _
    $region27: #{tpu_custom_call.1} parent=1 // pred_check_branch
      %375 = sbr.rel (0) target = $region29
    $region28: #{tpu_custom_call.1} parent=1 // pred_region
      %s377 = ssub.s32 16, 16
      %378 = vsyncadd [#allocation4], %s377
      %s380 = sshll.u32 [#allocation7], 4
      %s381 = int_to_ptr.vmem [resolvable:$true] %s380
      %383 = dma.vmem_to_hbm [thread:$0]  %s381, 16, %s4, [#allocation4]
    $region29: #{tpu_custom_call.1} parent=1 // pred_fallthru
      _
    // Predicated region
    $region30: #{tpu_custom_call.1} parent=1 // pred_check
      _
    $region31: #{tpu_custom_call.1} parent=1 // pred_check_branch
      %385 = sbr.rel (0) target = $region33
    $region32: #{tpu_custom_call.1} parent=1 // pred_region
      %386 = dma.done [#allocation4], 16
    $region33: #{tpu_custom_call.1} parent=1 // pred_fallthru
      _
    %387 = vsyncpa [#allocation3], 1
    %388 = vsyncpa [#allocation6], 1
    %389 = vsyncpa [#allocation4], 1

</llo_original>
